<compile_context>
chip_gen: v6e
topology: v6e:2x2x1
jax: 0.10.0
libtpu: 0.0.40
codegen_flags: <defaults>
</compile_context>

<pallas_src>
import jax
import jax.numpy as jnp
from jax import lax
from jax.experimental import pallas as pl
from jax.experimental.pallas import tpu as pltpu

LANE = 128
SUBLANE = 8


def _round_up(x, m):
    return ((x + m - 1) // m) * m


def _make_kernel(H, V_pad, n_gates, out_pad):
    """Closure over static layout decisions.

    Gate-column layout is PyTorch's [i, f, g, o]; when the forget block was
    dropped wrapper-side (n_gates == 3) it is [i, g, o].
    """
    g_idx = 1 if n_gates == 3 else 2
    o_idx = 2 if n_gates == 3 else 3

    def kernel(ids_ref, emb_ref, w1_ref, b1_ref, w2_ref, b2_ref,
               wl_ref, bl_ref, o_ref):
        tile_n = o_ref.shape[0]

        # ---- fused embedding gather: one-hot(ids) @ table on the MXU ----
        ids = ids_ref[...]                                      # (tile_n, 1) i32
        iota = lax.broadcasted_iota(jnp.int32, (tile_n, V_pad), 1)
        onehot = (iota == ids).astype(emb_ref.dtype)            # (tile_n, V_pad)
        e = jnp.dot(onehot, emb_ref[...],
                    preferred_element_type=jnp.float32)         # (tile_n, H) f32

        # ---- single-timestep LSTM cell with zero initial state ----
        # gates = x @ W_ih^T + (b_ih + b_hh); W_hh term vanishes (h0 == 0),
        # forget gate multiplies c0 == 0 and is dropped.
        def lstm_cell(x_f32, w_ref, b_ref):
            g = jnp.dot(x_f32.astype(w_ref.dtype), w_ref[...],
                        preferred_element_type=jnp.float32) + b_ref[...]
            i_g = jax.nn.sigmoid(g[:, 0:H])                     # input gate
            g_g = jnp.tanh(g[:, g_idx * H:(g_idx + 1) * H])     # cell candidate
            o_g = jax.nn.sigmoid(g[:, o_idx * H:(o_idx + 1) * H])  # output gate
            c = i_g * g_g
            return o_g * jnp.tanh(c)

        h1 = lstm_cell(e, w1_ref, b1_ref)
        h2 = lstm_cell(h1, w2_ref, b2_ref)   # inter-layer dropout: eval identity

        # ---- Linear + ReLU, lane-dense (padded to out_pad columns) ----
        y = jnp.dot(h2.astype(wl_ref.dtype), wl_ref[...],
                    preferred_element_type=jnp.float32) + bl_ref[...]
        o_ref[...] = jnp.maximum(y, 0.0)

    return kernel


def lstm2_encoder_forward(ids, params, *, max_tile_n=512,
                          weight_dtype=jnp.bfloat16):
    """ids: (N,) int32 token ids. Returns (N, 1, H) float32 (matches torch.stack)."""
    emb = params["embedding"]                     # (V, H)
    V, H = emb.shape
    N = ids.shape[0]

    # ---- static layout decisions ----
    # Drop the forget-gate weight block only if 3H stays lane-dense; otherwise
    # keep 4H (e.g. H=32 -> 4H=128 is exactly one vreg lane width).
    n_gates = 3 if (3 * H) % LANE == 0 else 4
    keep = [0, 2, 3] if n_gates == 3 else [0, 1, 2, 3]
    gc = n_gates * H
    out_pad = _round_up(H, LANE)                  # lane-dense output slab
    V_pad = _round_up(V, LANE)                    # padded one-hot contraction dim

    # Row tiling: one grid step for small N; otherwise big (multiple-of-8) tiles.
    N_sub = _round_up(N, SUBLANE)
    tile_n = min(N_sub, max_tile_n)
    N_pad = _round_up(N_sub, tile_n)

    # ---- parameter prep (weights -> (in, out), bf16 MXU inputs, f32 biases) ----
    def gate_cols(w):                             # torch (4H, H) -> (H, gc)
        w = w.T
        return jnp.concatenate([w[:, k * H:(k + 1) * H] for k in keep], axis=1)

    def gate_bias(b_ih, b_hh):
        b = b_ih + b_hh
        return jnp.concatenate([b[k * H:(k + 1) * H] for k in keep])[None, :]

    emb_p = jnp.zeros((V_pad, H), jnp.float32).at[:V].set(emb).astype(weight_dtype)
    w1 = gate_cols(params["w_ih_l0"]).astype(weight_dtype)
    b1 = gate_bias(params["b_ih_l0"], params["b_hh_l0"]).astype(jnp.float32)
    w2 = gate_cols(params["w_ih_l1"]).astype(weight_dtype)
    b2 = gate_bias(params["b_ih_l1"], params["b_hh_l1"]).astype(jnp.float32)
    wl = (jnp.zeros((H, out_pad), jnp.float32)
          .at[:, :H].set(params["linear_w"].T).astype(weight_dtype))
    bl = jnp.zeros((1, out_pad), jnp.float32).at[:, :H].set(params["linear_b"][None, :])

    ids_p = jnp.zeros((N_pad, 1), jnp.int32).at[:N, 0].set(ids.astype(jnp.int32))

    full = lambda i: (0, 0)
    out = pl.pallas_call(
        _make_kernel(H, V_pad, n_gates, out_pad),
        out_shape=jax.ShapeDtypeStruct((N_pad, out_pad), jnp.float32),
        grid_spec=pltpu.PrefetchScalarGridSpec(
            num_scalar_prefetch=0,
            grid=(N_pad // tile_n,),
            in_specs=[
                pl.BlockSpec((tile_n, 1), lambda i: (i, 0)),   # token ids
                pl.BlockSpec((V_pad, H), full),                # embedding table
                pl.BlockSpec((H, gc), full),                   # W_ih layer 0
                pl.BlockSpec((1, gc), full),                   # bias layer 0
                pl.BlockSpec((H, gc), full),                   # W_ih layer 1
                pl.BlockSpec((1, gc), full),                   # bias layer 1
                pl.BlockSpec((H, out_pad), full),              # W_linear (padded)
                pl.BlockSpec((1, out_pad), full),              # b_linear (padded)
            ],
            out_specs=pl.BlockSpec((tile_n, out_pad), lambda i: (i, 0)),
        ),
        compiler_params=pltpu.CompilerParams(
            dimension_semantics=("parallel",)),
    )(ids_p, emb_p, w1, b1, w2, b2, wl, bl)

    # torch.stack of per-token (1, H) tensors -> (N, 1, H); drop row/lane padding.
    return out[:N, :H][:, None, :]


def init_params(key, vocab_size, hidden):
    ks = jax.random.split(key, 12)
    s = 1.0 / jnp.sqrt(jnp.float32(hidden))
    u = lambda k, shape: jax.random.uniform(k, shape, jnp.float32, -s, s)
    return {
        "embedding": jax.random.normal(ks[0], (vocab_size, hidden), jnp.float32),
        # layer 0
        "w_ih_l0": u(ks[1], (4 * hidden, hidden)),
        "w_hh_l0": u(ks[2], (4 * hidden, hidden)),   # unused (h0 == 0), kept for fidelity
        "b_ih_l0": u(ks[3], (4 * hidden,)),
        "b_hh_l0": u(ks[4], (4 * hidden,)),
        # layer 1
        "w_ih_l1": u(ks[5], (4 * hidden, hidden)),
        "w_hh_l1": u(ks[6], (4 * hidden, hidden)),   # unused (h0 == 0)
        "b_ih_l1": u(ks[7], (4 * hidden,)),
        "b_hh_l1": u(ks[8], (4 * hidden,)),
        # output projection
        "linear_w": u(ks[9], (hidden, hidden)),
        "linear_b": u(ks[10], (hidden,)),
    }


if __name__ == "__main__":
    VOCAB = 10       # input_size (embedding vocab)
    HIDDEN = 32      # output_size (embedding dim == LSTM hidden == linear dim)
    N_TOKENS = 16    # number of ids in x

    key = jax.random.PRNGKey(0)
    pkey, xkey = jax.random.split(key)
    params = init_params(pkey, VOCAB, HIDDEN)
    x = jax.random.randint(xkey, (N_TOKENS,), 0, VOCAB, dtype=jnp.int32)

    out = lstm2_encoder_forward(x, params)
    jax.block_until_ready(out)
    assert out.shape == (N_TOKENS, 1, HIDDEN)
    print("KERNEL_OK")
</pallas_src>

<mosaic_0001>
module attributes {stable_mosaic.version = 11 : i64} {
  func.func @kernel(%arg0: i32, %arg1: memref<16x1xi32, #tpu.memory_space<vmem>>, %arg2: memref<128x32xbf16, #tpu.memory_space<vmem>>, %arg3: memref<32x128xbf16, #tpu.memory_space<vmem>>, %arg4: memref<1x128xf32, #tpu.memory_space<vmem>>, %arg5: memref<32x128xbf16, #tpu.memory_space<vmem>>, %arg6: memref<1x128xf32, #tpu.memory_space<vmem>>, %arg7: memref<32x128xbf16, #tpu.memory_space<vmem>>, %arg8: memref<1x128xf32, #tpu.memory_space<vmem>>, %arg9: memref<16x128xf32, #tpu.memory_space<vmem>>) attributes {dimension_semantics = [#tpu.dimension_semantics<parallel>], iteration_bounds = array<i64: 1>, scalar_prefetch = 0 : i64, scratch_operands = 0 : i64, tpu.core_type = #tpu.core_type<tc>, window_params = [{transform_indices = @transform_0, window_bounds = array<i64: 16, 1>}, {pipeline_mode = #tpu.pipeline_mode<synchronous>, transform_indices = @transform_1, window_bounds = array<i64: 128, 32>}, {pipeline_mode = #tpu.pipeline_mode<synchronous>, transform_indices = @transform_2, window_bounds = array<i64: 32, 128>}, {pipeline_mode = #tpu.pipeline_mode<synchronous>, transform_indices = @transform_3, window_bounds = array<i64: 1, 128>}, {pipeline_mode = #tpu.pipeline_mode<synchronous>, transform_indices = @transform_4, window_bounds = array<i64: 32, 128>}, {pipeline_mode = #tpu.pipeline_mode<synchronous>, transform_indices = @transform_5, window_bounds = array<i64: 1, 128>}, {pipeline_mode = #tpu.pipeline_mode<synchronous>, transform_indices = @transform_6, window_bounds = array<i64: 32, 128>}, {pipeline_mode = #tpu.pipeline_mode<synchronous>, transform_indices = @transform_7, window_bounds = array<i64: 1, 128>}, {transform_indices = @transform_8, window_bounds = array<i64: 16, 128>}]} {
    %c0 = arith.constant 0 : index
    %c0_0 = arith.constant 0 : index
    %0 = vector.load %arg1[%c0, %c0_0] : memref<16x1xi32, #tpu.memory_space<vmem>>, vector<16x1xi32>
    %1 = tpu.iota {dimensions = array<i32: 1>} : vector<16x128xi32>
    %2 = vector.broadcast %0 : vector<16x1xi32> to vector<16x128xi32>
    %3 = arith.cmpi eq, %1, %2 : vector<16x128xi32>
    %4 = arith.extui %3 : vector<16x128xi1> to vector<16x128xi32>
    %5 = arith.sitofp %4 : vector<16x128xi32> to vector<16x128xf32>
    %6 = arith.truncf %5 : vector<16x128xf32> to vector<16x128xbf16>
    %c0_1 = arith.constant 0 : index
    %c0_2 = arith.constant 0 : index
    %7 = vector.load %arg2[%c0_1, %c0_2] : memref<128x32xbf16, #tpu.memory_space<vmem>>, vector<128x32xbf16>
    %cst = arith.constant dense<0.000000e+00> : vector<16x32xf32>
    %8 = tpu.matmul %6, %7, %cst {dimension_numbers = #tpu.dot_dimension_numbers<[1], [0], [0], [1], [0, 0, 1, 1], [], []>} : vector<16x128xbf16>, vector<128x32xbf16>, vector<16x32xf32> -> vector<16x32xf32>
    %9 = arith.truncf %8 : vector<16x32xf32> to vector<16x32xbf16>
    %c0_3 = arith.constant 0 : index
    %c0_4 = arith.constant 0 : index
    %10 = vector.load %arg3[%c0_3, %c0_4] : memref<32x128xbf16, #tpu.memory_space<vmem>>, vector<32x128xbf16>
    %cst_5 = arith.constant dense<0.000000e+00> : vector<16x128xf32>
    %11 = tpu.matmul %9, %10, %cst_5 {dimension_numbers = #tpu.dot_dimension_numbers<[1], [0], [0], [1], [0, 0, 1, 1], [], []>} : vector<16x32xbf16>, vector<32x128xbf16>, vector<16x128xf32> -> vector<16x128xf32>
    %c0_6 = arith.constant 0 : index
    %c0_7 = arith.constant 0 : index
    %12 = vector.load %arg4[%c0_6, %c0_7] : memref<1x128xf32, #tpu.memory_space<vmem>>, vector<1x128xf32>
    %13 = vector.broadcast %12 : vector<1x128xf32> to vector<16x128xf32>
    %14 = arith.addf %11, %13 : vector<16x128xf32>
    %15 = vector.extract_strided_slice %14 {offsets = [0, 0], sizes = [16, 32], strides = [1, 1]} : vector<16x128xf32> to vector<16x32xf32>
    %16 = arith.negf %15 : vector<16x32xf32>
    %17 = math.exp %16 : vector<16x32xf32>
    %cst_8 = arith.constant 1.000000e+00 : f32
    %18 = vector.broadcast %cst_8 : f32 to vector<16x32xf32>
    %19 = arith.addf %18, %17 : vector<16x32xf32>
    %20 = arith.divf %18, %19 : vector<16x32xf32>
    %21 = vector.extract_strided_slice %14 {offsets = [0, 64], sizes = [16, 32], strides = [1, 1]} : vector<16x128xf32> to vector<16x32xf32>
    %22 = math.tanh %21 : vector<16x32xf32>
    %23 = vector.extract_strided_slice %14 {offsets = [0, 96], sizes = [16, 32], strides = [1, 1]} : vector<16x128xf32> to vector<16x32xf32>
    %24 = arith.negf %23 : vector<16x32xf32>
    %25 = math.exp %24 : vector<16x32xf32>
    %cst_9 = arith.constant 1.000000e+00 : f32
    %26 = vector.broadcast %cst_9 : f32 to vector<16x32xf32>
    %27 = arith.addf %26, %25 : vector<16x32xf32>
    %28 = arith.divf %26, %27 : vector<16x32xf32>
    %29 = arith.mulf %20, %22 : vector<16x32xf32>
    %30 = math.tanh %29 : vector<16x32xf32>
    %31 = arith.mulf %28, %30 : vector<16x32xf32>
    %32 = arith.truncf %31 : vector<16x32xf32> to vector<16x32xbf16>
    %c0_10 = arith.constant 0 : index
    %c0_11 = arith.constant 0 : index
    %33 = vector.load %arg5[%c0_10, %c0_11] : memref<32x128xbf16, #tpu.memory_space<vmem>>, vector<32x128xbf16>
    %cst_12 = arith.constant dense<0.000000e+00> : vector<16x128xf32>
    %34 = tpu.matmul %32, %33, %cst_12 {dimension_numbers = #tpu.dot_dimension_numbers<[1], [0], [0], [1], [0, 0, 1, 1], [], []>} : vector<16x32xbf16>, vector<32x128xbf16>, vector<16x128xf32> -> vector<16x128xf32>
    %c0_13 = arith.constant 0 : index
    %c0_14 = arith.constant 0 : index
    %35 = vector.load %arg6[%c0_13, %c0_14] : memref<1x128xf32, #tpu.memory_space<vmem>>, vector<1x128xf32>
    %36 = vector.broadcast %35 : vector<1x128xf32> to vector<16x128xf32>
    %37 = arith.addf %34, %36 : vector<16x128xf32>
    %38 = vector.extract_strided_slice %37 {offsets = [0, 0], sizes = [16, 32], strides = [1, 1]} : vector<16x128xf32> to vector<16x32xf32>
    %39 = arith.negf %38 : vector<16x32xf32>
    %40 = math.exp %39 : vector<16x32xf32>
    %cst_15 = arith.constant 1.000000e+00 : f32
    %41 = vector.broadcast %cst_15 : f32 to vector<16x32xf32>
    %42 = arith.addf %41, %40 : vector<16x32xf32>
    %43 = arith.divf %41, %42 : vector<16x32xf32>
    %44 = vector.extract_strided_slice %37 {offsets = [0, 64], sizes = [16, 32], strides = [1, 1]} : vector<16x128xf32> to vector<16x32xf32>
    %45 = math.tanh %44 : vector<16x32xf32>
    %46 = vector.extract_strided_slice %37 {offsets = [0, 96], sizes = [16, 32], strides = [1, 1]} : vector<16x128xf32> to vector<16x32xf32>
    %47 = arith.negf %46 : vector<16x32xf32>
    %48 = math.exp %47 : vector<16x32xf32>
    %cst_16 = arith.constant 1.000000e+00 : f32
    %49 = vector.broadcast %cst_16 : f32 to vector<16x32xf32>
    %50 = arith.addf %49, %48 : vector<16x32xf32>
    %51 = arith.divf %49, %50 : vector<16x32xf32>
    %52 = arith.mulf %43, %45 : vector<16x32xf32>
    %53 = math.tanh %52 : vector<16x32xf32>
    %54 = arith.mulf %51, %53 : vector<16x32xf32>
    %55 = arith.truncf %54 : vector<16x32xf32> to vector<16x32xbf16>
    %c0_17 = arith.constant 0 : index
    %c0_18 = arith.constant 0 : index
    %56 = vector.load %arg7[%c0_17, %c0_18] : memref<32x128xbf16, #tpu.memory_space<vmem>>, vector<32x128xbf16>
    %cst_19 = arith.constant dense<0.000000e+00> : vector<16x128xf32>
    %57 = tpu.matmul %55, %56, %cst_19 {dimension_numbers = #tpu.dot_dimension_numbers<[1], [0], [0], [1], [0, 0, 1, 1], [], []>} : vector<16x32xbf16>, vector<32x128xbf16>, vector<16x128xf32> -> vector<16x128xf32>
    %c0_20 = arith.constant 0 : index
    %c0_21 = arith.constant 0 : index
    %58 = vector.load %arg8[%c0_20, %c0_21] : memref<1x128xf32, #tpu.memory_space<vmem>>, vector<1x128xf32>
    %59 = vector.broadcast %58 : vector<1x128xf32> to vector<16x128xf32>
    %60 = arith.addf %57, %59 : vector<16x128xf32>
    %cst_22 = arith.constant 0.000000e+00 : f32
    %61 = vector.broadcast %cst_22 : f32 to vector<16x128xf32>
    %62 = arith.maximumf %60, %61 : vector<16x128xf32>
    %c0_23 = arith.constant 0 : index
    %c0_24 = arith.constant 0 : index
    %63 = vector.load %arg9[%c0_23, %c0_24] : memref<16x128xf32, #tpu.memory_space<vmem>>, vector<16x128xf32>
    tpu.vector_store %arg9[%c0_23, %c0_24], %62 {strides = array<i32>} : memref<16x128xf32, #tpu.memory_space<vmem>>, vector<16x128xf32>,
    return
  }
  func.func @transform_0(%arg0: i32) -> (i32, i32) {
    %c0_i32 = arith.constant 0 : i32
    %c0_i32_0 = arith.constant 0 : i32
    return %arg0, %c0_i32 : i32, i32
  }
  func.func @transform_1(%arg0: i32) -> (i32, i32) {
    %c0_i32 = arith.constant 0 : i32
    %c0_i32_0 = arith.constant 0 : i32
    %c0_i32_1 = arith.constant 0 : i32
    return %c0_i32, %c0_i32_0 : i32, i32
  }
  func.func @transform_2(%arg0: i32) -> (i32, i32) {
    %c0_i32 = arith.constant 0 : i32
    %c0_i32_0 = arith.constant 0 : i32
    %c0_i32_1 = arith.constant 0 : i32
    return %c0_i32, %c0_i32_0 : i32, i32
  }
  func.func @transform_3(%arg0: i32) -> (i32, i32) {
    %c0_i32 = arith.constant 0 : i32
    %c0_i32_0 = arith.constant 0 : i32
    %c0_i32_1 = arith.constant 0 : i32
    return %c0_i32, %c0_i32_0 : i32, i32
  }
  func.func @transform_4(%arg0: i32) -> (i32, i32) {
    %c0_i32 = arith.constant 0 : i32
    %c0_i32_0 = arith.constant 0 : i32
    %c0_i32_1 = arith.constant 0 : i32
    return %c0_i32, %c0_i32_0 : i32, i32
  }
  func.func @transform_5(%arg0: i32) -> (i32, i32) {
    %c0_i32 = arith.constant 0 : i32
    %c0_i32_0 = arith.constant 0 : i32
    %c0_i32_1 = arith.constant 0 : i32
    return %c0_i32, %c0_i32_0 : i32, i32
  }
  func.func @transform_6(%arg0: i32) -> (i32, i32) {
    %c0_i32 = arith.constant 0 : i32
    %c0_i32_0 = arith.constant 0 : i32
    %c0_i32_1 = arith.constant 0 : i32
    return %c0_i32, %c0_i32_0 : i32, i32
  }
  func.func @transform_7(%arg0: i32) -> (i32, i32) {
    %c0_i32 = arith.constant 0 : i32
    %c0_i32_0 = arith.constant 0 : i32
    %c0_i32_1 = arith.constant 0 : i32
    return %c0_i32, %c0_i32_0 : i32, i32
  }
  func.func @transform_8(%arg0: i32) -> (i32, i32) {
    %c0_i32 = arith.constant 0 : i32
    %c0_i32_0 = arith.constant 0 : i32
    return %arg0, %c0_i32 : i32, i32
  }
}

</mosaic_0001>

<llo_original>
// kernel: tpu_custom_call.1
$region0: #{tpu_custom_call.1}
  #allocation0 [shape = 'u32[]', space=smem, size = 0x4, offset = 0x4, fixed_abs, tag = 'smem constant byte address 0x4 - core index']
  #allocation1 [shape = 'u32[144,128]{1,0:T(1,128)}', space=vmem, size = 0x12000, scoped, tag = 'internal scratch']
  %s0 = inlined_call_operand.vmem [shape: s32[16,1], index: 0, kind: input, shape index: {}]
  %s1 = inlined_call_operand.vmem [shape: bf16[128,32], index: 1, kind: input, shape index: {}]
  %s2 = inlined_call_operand.vmem [shape: bf16[32,128], index: 2, kind: input, shape index: {}]
  %s3 = inlined_call_operand.vmem [shape: f32[1,128], index: 3, kind: input, shape index: {}]
  %s4 = inlined_call_operand.vmem [shape: bf16[32,128], index: 4, kind: input, shape index: {}]
  %s5 = inlined_call_operand.vmem [shape: f32[1,128], index: 5, kind: input, shape index: {}]
  %s6 = inlined_call_operand.vmem [shape: bf16[32,128], index: 6, kind: input, shape index: {}]
  %s7 = inlined_call_operand.vmem [shape: f32[1,128], index: 7, kind: input, shape index: {}]
  %s8 = inlined_call_operand.hbm [shape: f32[16,128], index: 8, kind: output, shape index: {}]
  %s9 = sld [smem:[#allocation0]]
  $region42: #{tpu_custom_call.1} parent=0
    _
  %s11 = ssub.s32 1, %s9
  %s12 = scalar_select 0, %s11, %s9
  $region1: #{tpu_custom_call.1} parent=0
    #allocation2 [shape = 'u8[8192]{0}', space=vmem, size = 0x2000, scoped, tag = 'output window, operand 0, single buffered']
    #allocation3 [shape = 's32[1]{0}', space=sflag, size = 0x4, scoped, tag = 'scoped memory for tpu_custom_call.1']
    %13 = vsyncpa [#allocation3], 0
    // Predicated region
    $region2: #{tpu_custom_call.1} parent=1 // pred_check
      _
    $region3: #{tpu_custom_call.1} parent=1 // pred_check_branch
      %15 = sbr.rel (0) target = $region5
    $region4: #{tpu_custom_call.1} parent=1 // pred_region
      _
    $region5: #{tpu_custom_call.1} parent=1 // pred_fallthru
      _
    // Predicated region
    $region6: #{tpu_custom_call.1} parent=1 // pred_check
      _
    $region7: #{tpu_custom_call.1} parent=1 // pred_check_branch
      %17 = sbr.rel (0) target = $region9
    $region8: #{tpu_custom_call.1} parent=1 // pred_region
      _
    $region9: #{tpu_custom_call.1} parent=1 // pred_fallthru
      _
    // Predicated region
    $region10: #{tpu_custom_call.1} parent=1 // pred_check
      _
    $region11: #{tpu_custom_call.1} parent=1 // pred_check_branch
      %19 = sbr.rel (0) target = $region13
    $region12: #{tpu_custom_call.1} parent=1 // pred_region
      _
    $region13: #{tpu_custom_call.1} parent=1 // pred_fallthru
      _
    // Predicated region
    $region14: #{tpu_custom_call.1} parent=1 // pred_check
      _
    $region15: #{tpu_custom_call.1} parent=1 // pred_check_branch
      %21 = sbr.rel (0) target = $region17
    $region16: #{tpu_custom_call.1} parent=1 // pred_region
      _
    $region17: #{tpu_custom_call.1} parent=1 // pred_fallthru
      _
    // Predicated region
    $region18: #{tpu_custom_call.1} parent=1 // pred_check
      _
    $region19: #{tpu_custom_call.1} parent=1 // pred_check_branch
      %23 = sbr.rel (0) target = $region21
    $region20: #{tpu_custom_call.1} parent=1 // pred_region
      _
    $region21: #{tpu_custom_call.1} parent=1 // pred_fallthru
      _
    // Predicated region
    $region22: #{tpu_custom_call.1} parent=1 // pred_check
      _
    $region23: #{tpu_custom_call.1} parent=1 // pred_check_branch
      %25 = sbr.rel (0) target = $region25
    $region24: #{tpu_custom_call.1} parent=1 // pred_region
      _
    $region25: #{tpu_custom_call.1} parent=1 // pred_fallthru
      _
    // Predicated region
    $region26: #{tpu_custom_call.1} parent=1 // pred_check
      _
    $region27: #{tpu_custom_call.1} parent=1 // pred_check_branch
      %27 = sbr.rel (0) target = $region29
    $region28: #{tpu_custom_call.1} parent=1 // pred_region
      _
    $region29: #{tpu_custom_call.1} parent=1 // pred_fallthru
      _
    // Predicated region
    $region30: #{tpu_custom_call.1} parent=1 // pred_check
      _
    $region31: #{tpu_custom_call.1} parent=1 // pred_check_branch
      %29 = sbr.rel (0) target = $region33
    $region32: #{tpu_custom_call.1} parent=1 // pred_region
      _
    $region33: #{tpu_custom_call.1} parent=1 // pred_fallthru
      _
    %v31 = vld [vmem:[%s0] sm:$0xff]
    %v32 = vld [vmem:[%s0 + $0x8] sm:$0xff]
    %v33 = vlaneseq
    %v34 = vand.u32 %v33, 127
    %35 = vset.pattern.permute.xlu0 0
    %36 = vperm.xlu0 %35, %v31
    %v37 = vpop.permute.xlu0 %36
    %38 = vset.pattern.permute.xlu0 0
    %39 = vperm.xlu0 %38, %v32
    %v40 = vpop.permute.xlu0 %39
    %vm41 = vcmp.eq.s32.totalorder %v34, %v37
    %vm42 = vcmp.eq.s32.totalorder %v34, %v40
    %v43 = vsel %vm41, 1, 0
    %v44 = vsel %vm42, 1, 0
    %v45 = vcvt.s32.f32 %v43
    %v46 = vcvt.s32.f32 %v44
    %v47 = vpack.c.bf16 %v46, %v45
    %v48 = vld [vmem:[%s1] sm:$0xf]
    %v49 = vld [vmem:[%s1 + $0x4] sm:$0xf]
    %v50 = vld [vmem:[%s1 + $0x8] sm:$0xf]
    %v51 = vld [vmem:[%s1 + $0xc] sm:$0xf]
    %v52 = vld [vmem:[%s1 + $0x10] sm:$0xf]
    %v53 = vld [vmem:[%s1 + $0x14] sm:$0xf]
    %v54 = vld [vmem:[%s1 + $0x18] sm:$0xf]
    %v55 = vld [vmem:[%s1 + $0x1c] sm:$0xf]
    %v56 = vld [vmem:[%s1 + $0x20] sm:$0xf]
    %v57 = vld [vmem:[%s1 + $0x24] sm:$0xf]
    %v58 = vld [vmem:[%s1 + $0x28] sm:$0xf]
    %v59 = vld [vmem:[%s1 + $0x2c] sm:$0xf]
    %v60 = vld [vmem:[%s1 + $0x30] sm:$0xf]
    %v61 = vld [vmem:[%s1 + $0x34] sm:$0xf]
    %v62 = vld [vmem:[%s1 + $0x38] sm:$0xf]
    %v63 = vld [vmem:[%s1 + $0x3c] sm:$0xf]
    %v80 = vunpack.c.l.b16 %v48
    %v81 = vunpack.c.l.b16 %v49
    %v82 = vunpack.c.l.b16 %v50
    %v83 = vunpack.c.l.b16 %v51
    %v84 = vunpack.c.l.b16 %v52
    %v85 = vunpack.c.l.b16 %v53
    %v86 = vunpack.c.l.b16 %v54
    %v87 = vunpack.c.l.b16 %v55
    %v88 = vunpack.c.l.b16 %v56
    %v89 = vunpack.c.l.b16 %v57
    %v90 = vunpack.c.l.b16 %v58
    %v91 = vunpack.c.l.b16 %v59
    %v92 = vunpack.c.l.b16 %v60
    %v93 = vunpack.c.l.b16 %v61
    %v94 = vunpack.c.l.b16 %v62
    %v95 = vunpack.c.l.b16 %v63
    %v96 = vpack.c.b16 %v81, %v80
    %v97 = vpack.c.b16 %v83, %v82
    %v98 = vpack.c.b16 %v85, %v84
    %v99 = vpack.c.b16 %v87, %v86
    %v100 = vpack.c.b16 %v89, %v88
    %v101 = vpack.c.b16 %v91, %v90
    %v102 = vpack.c.b16 %v93, %v92
    %v103 = vpack.c.b16 %v95, %v94
    %112 = vmatprep.subr.bf16.mxu0 0
    %113 = vmatpush1.bf16.msra.mxu0 %v103
    %114 = vmatprep.subr.bf16.mxu0 0
    %115 = vmatpush1.bf16.msra.mxu0 %v102
    %116 = vmatprep.subr.bf16.mxu0 0
    %117 = vmatpush1.bf16.msra.mxu0 %v101
    %118 = vmatprep.subr.bf16.mxu0 0
    %119 = vmatpush1.bf16.msra.mxu0 %v100
    %120 = vmatprep.subr.bf16.mxu0 0
    %121 = vmatpush1.bf16.msra.mxu0 %v99
    %122 = vmatprep.subr.bf16.mxu0 0
    %123 = vmatpush1.bf16.msra.mxu0 %v98
    %124 = vmatprep.subr.bf16.mxu0 0
    %125 = vmatpush1.bf16.msra.mxu0 %v97
    %126 = vmatprep.subr.bf16.mxu0 0
    %127 = vmatpush1.bf16.msra.mxu0 %v96
    %128 = vmatprep.subr.bf16.mxu0 0
    %129 = vmatpush2.bf16.msra.mxu0 0
    %130 = vmatprep.subr.bf16.mxu0 0
    %131 = vmatpush2.bf16.msra.mxu0 0
    %132 = vmatprep.subr.bf16.mxu0 0
    %133 = vmatpush2.bf16.msra.mxu0 0
    %134 = vmatprep.subr.bf16.mxu0 0
    %135 = vmatpush2.bf16.msra.mxu0 0
    %136 = vmatprep.subr.bf16.mxu0 0
    %137 = vmatpush2.bf16.msra.mxu0 0
    %138 = vmatprep.subr.bf16.mxu0 0
    %139 = vmatpush2.bf16.msra.mxu0 0
    %140 = vmatprep.subr.bf16.mxu0 0
    %141 = vmatpush2.bf16.msra.mxu0 0
    %142 = vmatprep.subr.bf16.mxu0 0
    %143 = vmatpush2.bf16.msra.mxu0 0
    %144 = vmatprep.mubr.bf16.mxu0 0
    %145 = vmatmul.mubr.bf16.gmra.mxu0 %v47
    %v146 = vpop.f32.mrf.mxu0
    %v147 = vadd.f32 0.0, %v146
    %v148 = vpop.f32.mrf.mxu0
    %v149 = vpop.f32.mrf.mxu0
    %v150 = vadd.f32 0.0, %v149
    %v151 = vpop.f32.mrf.mxu0
    %152 = vdwg.mxu0
    %v153 = vpack.c.bf16 %v150, %v147
    %v154 = vld [vmem:[%s2] sm:$0xf]
    %v155 = vld [vmem:[%s2 + $0x4] sm:$0xf]
    %v156 = vld [vmem:[%s2 + $0x8] sm:$0xf]
    %v157 = vld [vmem:[%s2 + $0xc] sm:$0xf]
    %v158 = vld [vmem:[%s3] sm:$0x1]
    %v160 = vlaneseq
    %v161 = vshrl.u32 %v160, 7
    %v162 = vsub.s32 0, %v161
    %v163 = vrot.slane %v158, %v162
    %v169 = vunpack.c.l.b16 %v154
    %v170 = vunpack.c.l.b16 %v155
    %v171 = vunpack.c.l.b16 %v156
    %v172 = vunpack.c.l.b16 %v157
    %v173 = vpack.c.b16 %v170, %v169
    %v174 = vpack.c.b16 %v172, %v171
    %vm177 = vcmask 261120
    %v179 = vsel %vm177, %v153, 0
    %181 = vmatprep.subr.bf16.mxu0 0
    %182 = vmatpush1.bf16.msra.mxu0 0
    %183 = vmatprep.subr.bf16.mxu0 0
    %184 = vmatpush1.bf16.msra.mxu0 0
    %185 = vmatprep.subr.bf16.mxu0 0
    %186 = vmatpush1.bf16.msra.mxu0 0
    %187 = vmatprep.subr.bf16.mxu0 0
    %188 = vmatpush1.bf16.msra.mxu0 0
    %189 = vmatprep.subr.bf16.mxu0 0
    %190 = vmatpush1.bf16.msra.mxu0 0
    %191 = vmatprep.subr.bf16.mxu0 0
    %192 = vmatpush1.bf16.msra.mxu0 0
    %193 = vmatprep.subr.bf16.mxu0 0
    %194 = vmatpush1.bf16.msra.mxu0 %v174
    %195 = vmatprep.subr.bf16.mxu0 0
    %196 = vmatpush1.bf16.msra.mxu0 %v173
    %197 = vmatprep.subr.bf16.mxu0 0
    %198 = vmatpush2.bf16.msra.mxu0 0
    %199 = vmatprep.subr.bf16.mxu0 0
    %200 = vmatpush2.bf16.msra.mxu0 0
    %201 = vmatprep.subr.bf16.mxu0 0
    %202 = vmatpush2.bf16.msra.mxu0 0
    %203 = vmatprep.subr.bf16.mxu0 0
    %204 = vmatpush2.bf16.msra.mxu0 0
    %205 = vmatprep.subr.bf16.mxu0 0
    %206 = vmatpush2.bf16.msra.mxu0 0
    %207 = vmatprep.subr.bf16.mxu0 0
    %208 = vmatpush2.bf16.msra.mxu0 0
    %209 = vmatprep.subr.bf16.mxu0 0
    %210 = vmatpush2.bf16.msra.mxu0 0
    %211 = vmatprep.subr.bf16.mxu0 0
    %212 = vmatpush2.bf16.msra.mxu0 0
    %213 = vmatprep.mubr.bf16.mxu0 0
    %214 = vmatmul.mubr.bf16.gmra.mxu0 %v179
    %v215 = vpop.f32.mrf.mxu0
    %v216 = vadd.f32 %v163, %v215
    %v217 = vpop.f32.mrf.mxu0
    %v218 = vpop.f32.mrf.mxu0
    %v219 = vadd.f32 %v163, %v218
    %v220 = vpop.f32.mrf.mxu0
    %221 = vdwg.mxu0
    %v222 = vxor.u32 %v216, 2147483648
    %v223 = vxor.u32 %v219, 2147483648
    %v224 = vmul.f32 %v222, 1.442695
    %v225 = vpow.pop %v224
    %v226 = vmul.f32 %v223, 1.442695
    %v227 = vpow.pop %v226
    %v228 = vadd.f32 %v225, 1.0
    %v229 = vadd.f32 %v227, 1.0
    %v230 = vrcp.pop %v228
    %v231 = vmul.f32 1.0, %v230
    %v232 = vrcp.pop %v229
    %v233 = vmul.f32 1.0, %v232
    %v234 = vtanh.pop %v216
    %v235 = vtanh.pop %v219
    %238 = vrot.lane.b32.xlu0 %v234, 64
    %v239 = vpop.permute.xlu0 %238
    %240 = vrot.lane.b32.xlu0 %v235, 64
    %v241 = vpop.permute.xlu0 %240
    %v244 = vmul.f32 %v231, %v239
    %v245 = vmul.f32 %v233, %v241
    %v246 = vtanh.pop %v244
    %v247 = vtanh.pop %v245
    %250 = vrot.lane.b32.xlu0 %v246, 96
    %v251 = vpop.permute.xlu0 %250
    %252 = vrot.lane.b32.xlu0 %v247, 96
    %v253 = vpop.permute.xlu0 %252
    %v256 = vmul.f32 %v231, %v251
    %v257 = vmul.f32 %v233, %v253
    %v258 = vpack.c.bf16 %v257, %v256
    %v259 = vld [vmem:[%s4] sm:$0xf]
    %v260 = vld [vmem:[%s4 + $0x4] sm:$0xf]
    %v261 = vld [vmem:[%s4 + $0x8] sm:$0xf]
    %v262 = vld [vmem:[%s4 + $0xc] sm:$0xf]
    %v263 = vld [vmem:[%s5] sm:$0x1]
    %v265 = vlaneseq
    %v266 = vshrl.u32 %v265, 7
    %v267 = vsub.s32 0, %v266
    %v268 = vrot.slane %v263, %v267
    %271 = vrot.lane.b32.xlu0 %v258, 32
    %v272 = vpop.permute.xlu0 %271
    %v277 = vunpack.c.l.b16 %v259
    %v278 = vunpack.c.l.b16 %v260
    %v279 = vunpack.c.l.b16 %v261
    %v280 = vunpack.c.l.b16 %v262
    %v281 = vpack.c.b16 %v278, %v277
    %v282 = vpack.c.b16 %v280, %v279
    %v286 = vsel %vm177, %v272, 0
    %288 = vmatprep.subr.bf16.mxu0 0
    %289 = vmatpush1.bf16.msra.mxu0 0
    %290 = vmatprep.subr.bf16.mxu0 0
    %291 = vmatpush1.bf16.msra.mxu0 0
    %292 = vmatprep.subr.bf16.mxu0 0
    %293 = vmatpush1.bf16.msra.mxu0 0
    %294 = vmatprep.subr.bf16.mxu0 0
    %295 = vmatpush1.bf16.msra.mxu0 0
    %296 = vmatprep.subr.bf16.mxu0 0
    %297 = vmatpush1.bf16.msra.mxu0 0
    %298 = vmatprep.subr.bf16.mxu0 0
    %299 = vmatpush1.bf16.msra.mxu0 0
    %300 = vmatprep.subr.bf16.mxu0 0
    %301 = vmatpush1.bf16.msra.mxu0 %v282
    %302 = vmatprep.subr.bf16.mxu0 0
    %303 = vmatpush1.bf16.msra.mxu0 %v281
    %304 = vmatprep.subr.bf16.mxu0 0
    %305 = vmatpush2.bf16.msra.mxu0 0
    %306 = vmatprep.subr.bf16.mxu0 0
    %307 = vmatpush2.bf16.msra.mxu0 0
    %308 = vmatprep.subr.bf16.mxu0 0
    %309 = vmatpush2.bf16.msra.mxu0 0
    %310 = vmatprep.subr.bf16.mxu0 0
    %311 = vmatpush2.bf16.msra.mxu0 0
    %312 = vmatprep.subr.bf16.mxu0 0
    %313 = vmatpush2.bf16.msra.mxu0 0
    %314 = vmatprep.subr.bf16.mxu0 0
    %315 = vmatpush2.bf16.msra.mxu0 0
    %316 = vmatprep.subr.bf16.mxu0 0
    %317 = vmatpush2.bf16.msra.mxu0 0
    %318 = vmatprep.subr.bf16.mxu0 0
    %319 = vmatpush2.bf16.msra.mxu0 0
    %320 = vmatprep.mubr.bf16.mxu0 0
    %321 = vmatmul.mubr.bf16.gmra.mxu0 %v286
    %v322 = vpop.f32.mrf.mxu0
    %v323 = vadd.f32 %v268, %v322
    %v324 = vpop.f32.mrf.mxu0
    %v325 = vpop.f32.mrf.mxu0
    %v326 = vadd.f32 %v268, %v325
    %v327 = vpop.f32.mrf.mxu0
    %328 = vdwg.mxu0
    %v329 = vxor.u32 %v323, 2147483648
    %v330 = vxor.u32 %v326, 2147483648
    %v331 = vmul.f32 %v329, 1.442695
    %v332 = vpow.pop %v331
    %v333 = vmul.f32 %v330, 1.442695
    %v334 = vpow.pop %v333
    %v335 = vadd.f32 %v332, 1.0
    %v336 = vadd.f32 %v334, 1.0
    %v337 = vrcp.pop %v335
    %v338 = vmul.f32 1.0, %v337
    %v339 = vrcp.pop %v336
    %v340 = vmul.f32 1.0, %v339
    %v341 = vtanh.pop %v323
    %v342 = vtanh.pop %v326
    %345 = vrot.lane.b32.xlu0 %v341, 64
    %v346 = vpop.permute.xlu0 %345
    %347 = vrot.lane.b32.xlu0 %v342, 64
    %v348 = vpop.permute.xlu0 %347
    %v351 = vmul.f32 %v338, %v346
    %v352 = vmul.f32 %v340, %v348
    %v353 = vtanh.pop %v351
    %v354 = vtanh.pop %v352
    %357 = vrot.lane.b32.xlu0 %v353, 96
    %v358 = vpop.permute.xlu0 %357
    %359 = vrot.lane.b32.xlu0 %v354, 96
    %v360 = vpop.permute.xlu0 %359
    %v363 = vmul.f32 %v338, %v358
    %v364 = vmul.f32 %v340, %v360
    %v365 = vpack.c.bf16 %v364, %v363
    %v366 = vld [vmem:[%s6] sm:$0xf]
    %v367 = vld [vmem:[%s6 + $0x4] sm:$0xf]
    %v368 = vld [vmem:[%s6 + $0x8] sm:$0xf]
    %v369 = vld [vmem:[%s6 + $0xc] sm:$0xf]
    %v370 = vld [vmem:[%s7] sm:$0x1]
    %v372 = vlaneseq
    %v373 = vshrl.u32 %v372, 7
    %v374 = vsub.s32 0, %v373
    %v375 = vrot.slane %v370, %v374
    %378 = vrot.lane.b32.xlu0 %v365, 32
    %v379 = vpop.permute.xlu0 %378
    %v384 = vunpack.c.l.b16 %v366
    %v385 = vunpack.c.l.b16 %v367
    %v386 = vunpack.c.l.b16 %v368
    %v387 = vunpack.c.l.b16 %v369
    %v388 = vpack.c.b16 %v385, %v384
    %v389 = vpack.c.b16 %v387, %v386
    %v393 = vsel %vm177, %v379, 0
    %395 = vmatprep.subr.bf16.mxu0 0
    %396 = vmatpush1.bf16.msra.mxu0 0
    %397 = vmatprep.subr.bf16.mxu0 0
    %398 = vmatpush1.bf16.msra.mxu0 0
    %399 = vmatprep.subr.bf16.mxu0 0
    %400 = vmatpush1.bf16.msra.mxu0 0
    %401 = vmatprep.subr.bf16.mxu0 0
    %402 = vmatpush1.bf16.msra.mxu0 0
    %403 = vmatprep.subr.bf16.mxu0 0
    %404 = vmatpush1.bf16.msra.mxu0 0
    %405 = vmatprep.subr.bf16.mxu0 0
    %406 = vmatpush1.bf16.msra.mxu0 0
    %407 = vmatprep.subr.bf16.mxu0 0
    %408 = vmatpush1.bf16.msra.mxu0 %v389
    %409 = vmatprep.subr.bf16.mxu0 0
    %410 = vmatpush1.bf16.msra.mxu0 %v388
    %411 = vmatprep.subr.bf16.mxu0 0
    %412 = vmatpush2.bf16.msra.mxu0 0
    %413 = vmatprep.subr.bf16.mxu0 0
    %414 = vmatpush2.bf16.msra.mxu0 0
    %415 = vmatprep.subr.bf16.mxu0 0
    %416 = vmatpush2.bf16.msra.mxu0 0
    %417 = vmatprep.subr.bf16.mxu0 0
    %418 = vmatpush2.bf16.msra.mxu0 0
    %419 = vmatprep.subr.bf16.mxu0 0
    %420 = vmatpush2.bf16.msra.mxu0 0
    %421 = vmatprep.subr.bf16.mxu0 0
    %422 = vmatpush2.bf16.msra.mxu0 0
    %423 = vmatprep.subr.bf16.mxu0 0
    %424 = vmatpush2.bf16.msra.mxu0 0
    %425 = vmatprep.subr.bf16.mxu0 0
    %426 = vmatpush2.bf16.msra.mxu0 0
    %427 = vmatprep.mubr.bf16.mxu0 0
    %428 = vmatmul.mubr.bf16.gmra.mxu0 %v393
    %v429 = vpop.f32.mrf.mxu0
    %v430 = vadd.f32 %v375, %v429
    %v431 = vpop.f32.mrf.mxu0
    %v432 = vpop.f32.mrf.mxu0
    %v433 = vadd.f32 %v375, %v432
    %v434 = vpop.f32.mrf.mxu0
    %435 = vdwg.mxu0
    %v436 = vmax.f32 %v430, 0.0
    %v437 = vmax.f32 %v433, 0.0
    %438 = vst [vmem:[#allocation2] sm:$0xff] %v436
    %439 = vst [vmem:[#allocation2 + $0x8] sm:$0xff] %v437
    // Predicated region
    $region34: #{tpu_custom_call.1} parent=1 // pred_check
      _
    $region35: #{tpu_custom_call.1} parent=1 // pred_check_branch
      %441 = sbr.rel (0) target = $region37
    $region36: #{tpu_custom_call.1} parent=1 // pred_region
      %s443 = ssub.s32 256, 256
      %444 = vsyncadd [#allocation3], %s443
      %s445 = sshll.u32 [#allocation2], 4
      %s446 = int_to_ptr.vmem [resolvable:$true] %s445
      %451 = dma.vmem_to_hbm [thread:$0]  %s446, 256, %s8, [#allocation3], 128, 128, 8
    $region37: #{tpu_custom_call.1} parent=1 // pred_fallthru
      _
    // Predicated region
    $region38: #{tpu_custom_call.1} parent=1 // pred_check
      _
    $region39: #{tpu_custom_call.1} parent=1 // pred_check_branch
      %453 = sbr.rel (0) target = $region41
    $region40: #{tpu_custom_call.1} parent=1 // pred_region
      %454 = dma.done [#allocation3], 256
    $region41: #{tpu_custom_call.1} parent=1 // pred_fallthru
      _
    %455 = vsyncpa [#allocation3], 1

</llo_original>
